<compile_context>
chip_gen: v7x
topology: tpu7x:2x2x1
jax: 0.10.0
libtpu: 0.0.40
codegen_flags: <defaults>
</compile_context>

<pallas_src>
import math
import functools

import jax
import jax.numpy as jnp
from jax.experimental import pallas as pl
from jax.experimental.pallas import tpu as pltpu


# ---------------------------------------------------------------------------
# Activation: GPT-2 "gelu_new" (tanh approximation), computed in f32 (EUP tanh).
# ---------------------------------------------------------------------------
_GELU_C = math.sqrt(2.0 / math.pi)


def _gelu_new(x):
    return 0.5 * x * (1.0 + jnp.tanh(_GELU_C * (x + 0.044715 * x * x * x)))


# ---------------------------------------------------------------------------
# Kernels
# ---------------------------------------------------------------------------
def _mlp_kernel_resident(x_ref, wfc_ref, bfc_ref, wproj_ref, bproj_ref, o_ref):
    """Both weight matrices VMEM-resident; grid = (row tiles,)."""
    h = jnp.dot(x_ref[...], wfc_ref[...], preferred_element_type=jnp.float32)
    h = _gelu_new(h + bfc_ref[...])
    out = jnp.dot(h.astype(wproj_ref.dtype), wproj_ref[...],
                  preferred_element_type=jnp.float32)
    o_ref[...] = (out + bproj_ref[...]).astype(o_ref.dtype)


def _mlp_kernel_tiled_f32out(x_ref, wfc_ref, bfc_ref, wproj_ref, bproj_ref, o_ref):
    """Hidden dim tiled (reduction = grid axis 1); accumulate into f32 o_ref."""
    j = pl.program_id(1)

    h = jnp.dot(x_ref[...], wfc_ref[...], preferred_element_type=jnp.float32)
    h = _gelu_new(h + bfc_ref[...])
    part = jnp.dot(h.astype(wproj_ref.dtype), wproj_ref[...],
                   preferred_element_type=jnp.float32)

    @pl.when(j == 0)
    def _():
        o_ref[...] = part + bproj_ref[...]

    @pl.when(j != 0)
    def _():
        o_ref[...] += part


def _mlp_kernel_tiled_acc(x_ref, wfc_ref, bfc_ref, wproj_ref, bproj_ref, o_ref,
                          acc_ref):
    """Hidden dim tiled; f32 scratch accumulator for non-f32 output dtypes."""
    j = pl.program_id(1)

    @pl.when(j == 0)
    def _():
        acc_ref[...] = jnp.zeros_like(acc_ref)

    h = jnp.dot(x_ref[...], wfc_ref[...], preferred_element_type=jnp.float32)
    h = _gelu_new(h + bfc_ref[...])
    acc_ref[...] += jnp.dot(h.astype(wproj_ref.dtype), wproj_ref[...],
                            preferred_element_type=jnp.float32)

    @pl.when(j == pl.num_programs(1) - 1)
    def _():
        o_ref[...] = (acc_ref[...] + bproj_ref[...]).astype(o_ref.dtype)


# ---------------------------------------------------------------------------
# Tile selection / VMEM budgeting
# ---------------------------------------------------------------------------
def _round_up(v, m):
    return (v + m - 1) // m * m


def _vmem_cap_bytes():
    """Physical VMEM capacity (falls back to v7x's 64 MiB, the smallest)."""
    try:
        info = pltpu.get_tpu_info()
        cap = getattr(info, "vmem_capacity_bytes", None)
        if cap:
            return int(cap)
    except Exception:
        pass
    return 64 << 20


def _resident_footprint(tm, nx, n_state, wd, xd, od):
    # Every BlockSpec buffer counted double-buffered (conservative).
    return (2 * tm * nx * (xd + od)
            + 2 * 2 * nx * n_state * wd
            + 2 * (n_state + nx) * 4)


def _tiled_footprint(tm, th, nx, wd, xd, od, need_acc):
    f = (2 * tm * nx * (xd + od)
         + 2 * 2 * nx * th * wd
         + 2 * (th + nx) * 4)
    if need_acc:
        f += tm * nx * 4
    return f


def _pick_tiles(M, nx, n_state, block_m, wd, xd, od, budget, out_is_f32,
                force_tiled):
    """Returns (tm, th_or_None, need_acc). th is None => weights fully resident."""
    need_acc = not out_is_f32
    # >= 2 row tiles whenever possible so the "parallel" axis shards across the
    # two v7x TensorCores; always a multiple of 8 (sublane).
    tm = min(block_m, max(8, _round_up(-(-M // 2), 8)))
    tm = _round_up(tm, 8)
    while True:
        if (not force_tiled
                and _resident_footprint(tm, nx, n_state, wd, xd, od) <= budget):
            return tm, None, False
        # Prefer 256-aligned hidden tiles (2x256x256 MXU on v6e/v7x); 128 only
        # as a last resort.
        for th in (1024, 512, 256, 128):
            if th > n_state:
                continue
            if _tiled_footprint(tm, th, nx, wd, xd, od, need_acc) <= budget:
                return tm, th, need_acc
        if tm <= 8:
            return tm, 128, need_acc
        tm = max(8, _round_up(tm // 2, 8))


# ---------------------------------------------------------------------------
# Wrapper
# ---------------------------------------------------------------------------
@functools.partial(jax.jit,
                   static_argnames=("block_m", "compute_dtype", "force_tiled"))
def mlp_forward(x, w_fc, b_fc, w_proj, b_proj, *,
                block_m=1024, compute_dtype=jnp.bfloat16, force_tiled=False):
    """Fused GPT-2 MLP: gelu_new(x @ w_fc + b_fc) @ w_proj + b_proj.

    x: (..., n_embd); w_fc: (n_embd, n_state); w_proj: (n_state, n_embd).
    Matmuls run on the MXU in `compute_dtype` (bf16 default) with f32
    accumulation; bias / gelu math is f32. Dropout is identity (eval mode).
    """
    orig_dtype = x.dtype
    nx = x.shape[-1]
    n_state = w_fc.shape[1]
    assert w_fc.shape == (nx, n_state)
    assert b_fc.shape == (n_state,)
    assert w_proj.shape == (n_state, nx)
    assert b_proj.shape == (nx,)

    lead_shape = x.shape[:-1]
    M = 1
    for d in lead_shape:
        M *= d

    cdt = jnp.dtype(compute_dtype)
    xd = cdt.itemsize          # x tile element size
    wd = cdt.itemsize          # weight tile element size
    od = jnp.dtype(orig_dtype).itemsize

    cap = _vmem_cap_bytes()
    budget = int(cap * 0.7)

    out_is_f32 = jnp.dtype(orig_dtype) == jnp.dtype(jnp.float32)
    tm, th, need_acc = _pick_tiles(M, nx, n_state, block_m, wd, xd, od,
                                   budget, out_is_f32, force_tiled)

    # ---- Row padding & dtype casts ---------------------------------------
    m_pad = _round_up(max(M, tm), tm)
    x2 = x.reshape(M, nx).astype(cdt)
    if m_pad != M:
        x2 = jnp.pad(x2, ((0, m_pad - M), (0, 0)))

    w_fc_c = w_fc.astype(cdt)
    w_proj_c = w_proj.astype(cdt)
    b_fc2 = b_fc.reshape(1, n_state).astype(jnp.float32)
    b_proj2 = b_proj.reshape(1, nx).astype(jnp.float32)

    # ---- Grid / specs ------------------------------------------------------
    if th is None:
        # Weight-resident: weights DMA'd once per kernel, no reduction axis.
        n_state_p = n_state
        grid = (m_pad // tm,)
        in_specs = [
            pl.BlockSpec((tm, nx), lambda i: (i, 0)),            # x rows
            pl.BlockSpec((nx, n_state), lambda i: (0, 0)),       # w_fc (full)
            pl.BlockSpec((1, n_state), lambda i: (0, 0)),        # b_fc
            pl.BlockSpec((n_state, nx), lambda i: (0, 0)),       # w_proj (full)
            pl.BlockSpec((1, nx), lambda i: (0, 0)),             # b_proj
        ]
        out_specs = pl.BlockSpec((tm, nx), lambda i: (i, 0))
        scratch_shapes = []
        kernel = _mlp_kernel_resident
        dim_sem = ("parallel",)
        weight_reads = 1
        footprint = _resident_footprint(tm, nx, n_state, wd, xd, od)
    else:
        # Hidden-tiled: reduction axis last; output block resident across j.
        n_state_p = _round_up(n_state, th)
        if n_state_p != n_state:
            pad_h = n_state_p - n_state
            w_fc_c = jnp.pad(w_fc_c, ((0, 0), (0, pad_h)))
            b_fc2 = jnp.pad(b_fc2, ((0, 0), (0, pad_h)))
            w_proj_c = jnp.pad(w_proj_c, ((0, pad_h), (0, 0)))
        grid = (m_pad // tm, n_state_p // th)
        in_specs = [
            pl.BlockSpec((tm, nx), lambda i, j: (i, 0)),         # x rows
            pl.BlockSpec((nx, th), lambda i, j: (0, j)),         # w_fc tile
            pl.BlockSpec((1, th), lambda i, j: (0, j)),          # b_fc tile
            pl.BlockSpec((th, nx), lambda i, j: (j, 0)),         # w_proj tile
            pl.BlockSpec((1, nx), lambda i, j: (0, 0)),          # b_proj
        ]
        out_specs = pl.BlockSpec((tm, nx), lambda i, j: (i, 0))
        if need_acc:
            scratch_shapes = [pltpu.VMEM((tm, nx), jnp.float32)]
            kernel = _mlp_kernel_tiled_acc
        else:
            scratch_shapes = []
            kernel = _mlp_kernel_tiled_f32out
        dim_sem = ("parallel", "arbitrary")
        weight_reads = m_pad // tm
        footprint = _tiled_footprint(tm, th, nx, wd, xd, od, need_acc)

    vmem_limit = int(min(cap, max(int(footprint * 1.5), 32 << 20)))

    flops = 4 * m_pad * nx * n_state_p
    bytes_accessed = (
        m_pad * nx * (xd + od)                            # read x, write out
        + weight_reads * 2 * nx * n_state_p * wd          # weights (re-)streamed
        + (n_state_p + nx) * 4                            # biases
    )

    out = pl.pallas_call(
        kernel,
        out_shape=jax.ShapeDtypeStruct((m_pad, nx), orig_dtype),
        grid_spec=pltpu.PrefetchScalarGridSpec(
            num_scalar_prefetch=0,
            grid=grid,
            in_specs=in_specs,
            out_specs=out_specs,
            scratch_shapes=scratch_shapes,
        ),
        compiler_params=pltpu.CompilerParams(
            dimension_semantics=dim_sem,
            vmem_limit_bytes=vmem_limit,
        ),
        cost_estimate=pl.CostEstimate(
            flops=flops,
            transcendentals=m_pad * n_state_p,
            bytes_accessed=bytes_accessed,
        ),
    )(x2, w_fc_c, b_fc2, w_proj_c, b_proj2)

    # TODO(synk): resid_pdrop dropout is identity here (eval mode); a training
    # variant would draw a mask via pltpu.prng_seed / pltpu.stateful_bernoulli.
    return out[:M].reshape(*lead_shape, nx)


# ---------------------------------------------------------------------------
# Pure-JAX reference (mirrors the PyTorch MLP in eval mode)
# ---------------------------------------------------------------------------
def _reference(x, w_fc, b_fc, w_proj, b_proj):
    h = _gelu_new(jnp.einsum("...d,dh->...h", x, w_fc) + b_fc)
    return jnp.einsum("...h,hd->...d", h, w_proj) + b_proj


if __name__ == "__main__":
    key = jax.random.PRNGKey(0)
    batch, seq, n_embd = 2, 8, 32
    n_state = 4 * n_embd  # 128, GPT-2 convention

    k1, k2, k3, k4, k5 = jax.random.split(key, 5)
    x = jax.random.normal(k1, (batch, seq, n_embd), dtype=jnp.float32)
    w_fc = 0.02 * jax.random.normal(k2, (n_embd, n_state), dtype=jnp.float32)
    b_fc = 0.02 * jax.random.normal(k3, (n_state,), dtype=jnp.float32)
    w_proj = 0.02 * jax.random.normal(k4, (n_state, n_embd), dtype=jnp.float32)
    b_proj = 0.02 * jax.random.normal(k5, (n_embd,), dtype=jnp.float32)

    ref = _reference(x, w_fc, b_fc, w_proj, b_proj)

    # Default path: bf16 matmuls (MXU peak), f32 gelu/bias/accumulation.
    out_bf16 = jax.block_until_ready(mlp_forward(x, w_fc, b_fc, w_proj, b_proj))
    assert out_bf16.shape == (batch, seq, n_embd), out_bf16.shape
    assert out_bf16.dtype == jnp.float32
    assert jnp.allclose(out_bf16, ref, atol=5e-3, rtol=5e-2), "bf16 path mismatch"

    # Full-precision path: tight structural check.
    out_f32 = jax.block_until_ready(
        mlp_forward(x, w_fc, b_fc, w_proj, b_proj, compute_dtype=jnp.float32))
    assert jnp.allclose(out_f32, ref, atol=1e-5, rtol=1e-5), "f32 path mismatch"

    # Exercise the hidden-tiled (reduction-grid) variant as well.
    out_tiled = jax.block_until_ready(
        mlp_forward(x, w_fc, b_fc, w_proj, b_proj,
                    compute_dtype=jnp.float32, force_tiled=True))
    assert jnp.allclose(out_tiled, ref, atol=1e-5, rtol=1e-5), "tiled path mismatch"

    print("KERNEL_OK")
</pallas_src>

<mosaic_0001>
module attributes {stable_mosaic.version = 11 : i64} {
  func.func @_mlp_kernel_resident(%arg0: i32, %arg1: memref<8x32xbf16, #tpu.memory_space<vmem>>, %arg2: memref<32x128xbf16, #tpu.memory_space<vmem>>, %arg3: memref<1x128xf32, #tpu.memory_space<vmem>>, %arg4: memref<128x32xbf16, #tpu.memory_space<vmem>>, %arg5: memref<1x32xf32, #tpu.memory_space<vmem>>, %arg6: memref<8x32xf32, #tpu.memory_space<vmem>>) attributes {dimension_semantics = [#tpu.dimension_semantics<parallel>], iteration_bounds = array<i64: 2>, scalar_prefetch = 0 : i64, scratch_operands = 0 : i64, tpu.core_type = #tpu.core_type<tc>, window_params = [{transform_indices = @transform_0, window_bounds = array<i64: 8, 32>}, {pipeline_mode = #tpu.pipeline_mode<synchronous>, transform_indices = @transform_1, window_bounds = array<i64: 32, 128>}, {pipeline_mode = #tpu.pipeline_mode<synchronous>, transform_indices = @transform_2, window_bounds = array<i64: 1, 128>}, {pipeline_mode = #tpu.pipeline_mode<synchronous>, transform_indices = @transform_3, window_bounds = array<i64: 128, 32>}, {pipeline_mode = #tpu.pipeline_mode<synchronous>, transform_indices = @transform_4, window_bounds = array<i64: 1, 32>}, {transform_indices = @transform_5, window_bounds = array<i64: 8, 32>}]} {
    %c0 = arith.constant 0 : index
    %c0_0 = arith.constant 0 : index
    %0 = vector.load %arg1[%c0, %c0_0] : memref<8x32xbf16, #tpu.memory_space<vmem>>, vector<8x32xbf16>
    %c0_1 = arith.constant 0 : index
    %c0_2 = arith.constant 0 : index
    %1 = vector.load %arg2[%c0_1, %c0_2] : memref<32x128xbf16, #tpu.memory_space<vmem>>, vector<32x128xbf16>
    %cst = arith.constant dense<0.000000e+00> : vector<8x128xf32>
    %2 = tpu.matmul %0, %1, %cst {dimension_numbers = #tpu.dot_dimension_numbers<[1], [0], [0], [1], [0, 0, 1, 1], [], []>} : vector<8x32xbf16>, vector<32x128xbf16>, vector<8x128xf32> -> vector<8x128xf32>
    %c0_3 = arith.constant 0 : index
    %c0_4 = arith.constant 0 : index
    %3 = vector.load %arg3[%c0_3, %c0_4] : memref<1x128xf32, #tpu.memory_space<vmem>>, vector<1x128xf32>
    %4 = vector.broadcast %3 : vector<1x128xf32> to vector<8x128xf32>
    %5 = arith.addf %2, %4 : vector<8x128xf32>
    %cst_5 = arith.constant 5.000000e-01 : f32
    %6 = vector.broadcast %cst_5 : f32 to vector<8x128xf32>
    %7 = arith.mulf %6, %5 : vector<8x128xf32>
    %cst_6 = arith.constant 4.471500e-02 : f32
    %8 = vector.broadcast %cst_6 : f32 to vector<8x128xf32>
    %9 = arith.mulf %8, %5 : vector<8x128xf32>
    %10 = arith.mulf %9, %5 : vector<8x128xf32>
    %11 = arith.mulf %10, %5 : vector<8x128xf32>
    %12 = arith.addf %5, %11 : vector<8x128xf32>
    %cst_7 = arith.constant 0.797884583 : f32
    %13 = vector.broadcast %cst_7 : f32 to vector<8x128xf32>
    %14 = arith.mulf %13, %12 : vector<8x128xf32>
    %15 = math.tanh %14 : vector<8x128xf32>
    %cst_8 = arith.constant 1.000000e+00 : f32
    %16 = vector.broadcast %cst_8 : f32 to vector<8x128xf32>
    %17 = arith.addf %16, %15 : vector<8x128xf32>
    %18 = arith.mulf %7, %17 : vector<8x128xf32>
    %19 = arith.truncf %18 : vector<8x128xf32> to vector<8x128xbf16>
    %c0_9 = arith.constant 0 : index
    %c0_10 = arith.constant 0 : index
    %20 = vector.load %arg4[%c0_9, %c0_10] : memref<128x32xbf16, #tpu.memory_space<vmem>>, vector<128x32xbf16>
    %cst_11 = arith.constant dense<0.000000e+00> : vector<8x32xf32>
    %21 = tpu.matmul %19, %20, %cst_11 {dimension_numbers = #tpu.dot_dimension_numbers<[1], [0], [0], [1], [0, 0, 1, 1], [], []>} : vector<8x128xbf16>, vector<128x32xbf16>, vector<8x32xf32> -> vector<8x32xf32>
    %c0_12 = arith.constant 0 : index
    %c0_13 = arith.constant 0 : index
    %22 = vector.load %arg5[%c0_12, %c0_13] : memref<1x32xf32, #tpu.memory_space<vmem>>, vector<1x32xf32>
    %23 = vector.broadcast %22 : vector<1x32xf32> to vector<8x32xf32>
    %24 = arith.addf %21, %23 : vector<8x32xf32>
    %c0_14 = arith.constant 0 : index
    %c0_15 = arith.constant 0 : index
    %25 = vector.load %arg6[%c0_14, %c0_15] : memref<8x32xf32, #tpu.memory_space<vmem>>, vector<8x32xf32>
    tpu.vector_store %arg6[%c0_14, %c0_15], %24 {strides = array<i32>} : memref<8x32xf32, #tpu.memory_space<vmem>>, vector<8x32xf32>,
    return
  }
  func.func @transform_0(%arg0: i32) -> (i32, i32) {
    %c0_i32 = arith.constant 0 : i32
    %c0_i32_0 = arith.constant 0 : i32
    return %arg0, %c0_i32 : i32, i32
  }
  func.func @transform_1(%arg0: i32) -> (i32, i32) {
    %c0_i32 = arith.constant 0 : i32
    %c0_i32_0 = arith.constant 0 : i32
    %c0_i32_1 = arith.constant 0 : i32
    return %c0_i32, %c0_i32_0 : i32, i32
  }
  func.func @transform_2(%arg0: i32) -> (i32, i32) {
    %c0_i32 = arith.constant 0 : i32
    %c0_i32_0 = arith.constant 0 : i32
    %c0_i32_1 = arith.constant 0 : i32
    return %c0_i32, %c0_i32_0 : i32, i32
  }
  func.func @transform_3(%arg0: i32) -> (i32, i32) {
    %c0_i32 = arith.constant 0 : i32
    %c0_i32_0 = arith.constant 0 : i32
    %c0_i32_1 = arith.constant 0 : i32
    return %c0_i32, %c0_i32_0 : i32, i32
  }
  func.func @transform_4(%arg0: i32) -> (i32, i32) {
    %c0_i32 = arith.constant 0 : i32
    %c0_i32_0 = arith.constant 0 : i32
    %c0_i32_1 = arith.constant 0 : i32
    return %c0_i32, %c0_i32_0 : i32, i32
  }
  func.func @transform_5(%arg0: i32) -> (i32, i32) {
    %c0_i32 = arith.constant 0 : i32
    %c0_i32_0 = arith.constant 0 : i32
    return %arg0, %c0_i32 : i32, i32
  }
}

</mosaic_0001>

<llo_original>
// kernel: mlp_forward.1
$region0: #{mlp_forward.1}
  #allocation0 [shape = 'u32[]', space=smem, size = 0x4, offset = 0x4, fixed_abs, tag = 'smem constant byte address 0x4 - core index']
  #allocation1 [shape = 'u32[144,128]{1,0:T(1,128)}', space=vmem, size = 0x12000, scoped, tag = 'internal scratch']
  %s0 = inlined_call_operand.vmem [shape: bf16[16,32], index: 0, kind: input, shape index: {}]
  %s1 = inlined_call_operand.vmem [shape: bf16[32,128], index: 1, kind: input, shape index: {}]
  %s2 = inlined_call_operand.vmem [shape: f32[1,128], index: 2, kind: input, shape index: {}]
  %s3 = inlined_call_operand.vmem [shape: bf16[128,32], index: 3, kind: input, shape index: {}]
  %s4 = inlined_call_operand.vmem [shape: f32[1,32], index: 4, kind: input, shape index: {}]
  %s5 = inlined_call_operand.hbm [shape: f32[16,32], index: 5, kind: output, shape index: {}]
  %s6 = sld [smem:[#allocation0]]
  $region53: #{mlp_forward.1} parent=0
    _
  %s8 = ssub.s32 1, %s6
  %s9 = scalar_select 0, %s8, %s6
  $region1: #{mlp_forward.1} parent=0
    #allocation2 [shape = 'u8[8192]{0}', space=vmem, size = 0x2000, scoped, tag = 'output window, operand 0']
    #allocation3 [shape = 's32[2]{0}', space=sflag, size = 0x8, scoped, tag = 'scoped memory for mlp_forward.1']
    %10 = vsyncpa [#allocation3], 0
    %s11 = scalar_lea.sflag [#allocation3], 1
    %12 = vsyncpa %s11, 0
    loop: start=0, step=1, limit=4
    $region2: #{mlp_forward.1} parent=1 // loop_pre_header
      _
    $region3: #{mlp_forward.1} parent=1 // loop_header
      %s14 = sphi 0, %s18
      %p15 = scmp.ge.s32.totalorder %s14, 4
      %s24 = sphi 0, %s26
      %s27 = sphi 0, %s24
      %s28 = sphi 0, %s27
      %s44 = sphi 0, %s28
      %s48 = sphi 0, %s48
      %s50 = sphi 0, %s48
      %s51 = sphi 0, %s50
      %s65 = sphi 0, %s51
      %s69 = sphi 0, %s69
      %s71 = sphi 0, %s69
      %s72 = sphi 0, %s71
      %s86 = sphi 0, %s72
      %s90 = sphi 0, %s90
      %s92 = sphi 0, %s90
      %s93 = sphi 0, %s92
      %s107 = sphi 0, %s93
      %s111 = sphi 0, %s111
      %s113 = sphi 0, %s111
      %s114 = sphi 0, %s113
      %s128 = sphi 0, %s114
      %s134 = sphi 0, %s136
      %s137 = sphi 0, %s134
      %s138 = sphi 0, %s137
      %s154 = sphi 0, %s138
    $region4: #{mlp_forward.1} parent=1 // loop_header_branch
      %17 = sbr.rel (%p15) target = $region8
    $region5: #{mlp_forward.1} parent=1 // loop_body
      %s19 = ssub.s32 %s14, 1
      %s20 = ssub.s32 %s14, 2
      %s21 = sadd.s32 %s14, 1
      %s22 = ssub.s32 %s14, %s21
      %p23 = scmp.eq.s32.totalorder %s22, 0
      %s25 = sadd.s32 %s24, 1
      %s26 = scalar_select %p23, %s24, %s25
      %p29 = pneg %p23
      %p30 = scmp.eq.s32.totalorder %s14, 1
      %p31 = por %p29, %p30
      %p32 = scmp.ne.s32.totalorder %s24, %s27
      %p33 = scmp.eq.s32.totalorder %s14, 0
      %p34 = por %p32, %p33
      %p35 = scmp.ne.s32.totalorder %s24, %s27
      %p36 = scmp.eq.s32.totalorder %s19, 1
      %p37 = por %p35, %p36
      %p38 = scmp.ne.s32.totalorder %s27, %s28
      %p39 = scmp.eq.s32.totalorder %s19, 0
      %p40 = por %p38, %p39
      %p41 = scmp.ne.s32.totalorder %s27, %s28
      %p42 = scmp.eq.s32.totalorder %s20, 1
      %p43 = por %p41, %p42
      %p45 = scmp.ne.s32.totalorder %s28, %s44
      %p46 = scmp.eq.s32.totalorder %s20, 0
      %p47 = por %p45, %p46
      %s49 = sadd.s32 %s48, 1
      %p52 = scmp.eq.s32.totalorder %s14, 1
      %p53 = scmp.ne.s32.totalorder %s48, %s50
      %p54 = scmp.eq.s32.totalorder %s14, 0
      %p55 = por %p53, %p54
      %p56 = scmp.ne.s32.totalorder %s48, %s50
      %p57 = scmp.eq.s32.totalorder %s19, 1
      %p58 = por %p56, %p57
      %p59 = scmp.ne.s32.totalorder %s50, %s51
      %p60 = scmp.eq.s32.totalorder %s19, 0
      %p61 = por %p59, %p60
      %p62 = scmp.ne.s32.totalorder %s50, %s51
      %p63 = scmp.eq.s32.totalorder %s20, 1
      %p64 = por %p62, %p63
      %p66 = scmp.ne.s32.totalorder %s51, %s65
      %p67 = scmp.eq.s32.totalorder %s20, 0
      %p68 = por %p66, %p67
      %s70 = sadd.s32 %s69, 1
      %p73 = scmp.eq.s32.totalorder %s14, 1
      %p74 = scmp.ne.s32.totalorder %s69, %s71
      %p75 = scmp.eq.s32.totalorder %s14, 0
      %p76 = por %p74, %p75
      %p77 = scmp.ne.s32.totalorder %s69, %s71
      %p78 = scmp.eq.s32.totalorder %s19, 1
      %p79 = por %p77, %p78
      %p80 = scmp.ne.s32.totalorder %s71, %s72
      %p81 = scmp.eq.s32.totalorder %s19, 0
      %p82 = por %p80, %p81
      %p83 = scmp.ne.s32.totalorder %s71, %s72
      %p84 = scmp.eq.s32.totalorder %s20, 1
      %p85 = por %p83, %p84
      %p87 = scmp.ne.s32.totalorder %s72, %s86
      %p88 = scmp.eq.s32.totalorder %s20, 0
      %p89 = por %p87, %p88
      %s91 = sadd.s32 %s90, 1
      %p94 = scmp.eq.s32.totalorder %s14, 1
      %p95 = scmp.ne.s32.totalorder %s90, %s92
      %p96 = scmp.eq.s32.totalorder %s14, 0
      %p97 = por %p95, %p96
      %p98 = scmp.ne.s32.totalorder %s90, %s92
      %p99 = scmp.eq.s32.totalorder %s19, 1
      %p100 = por %p98, %p99
      %p101 = scmp.ne.s32.totalorder %s92, %s93
      %p102 = scmp.eq.s32.totalorder %s19, 0
      %p103 = por %p101, %p102
      %p104 = scmp.ne.s32.totalorder %s92, %s93
      %p105 = scmp.eq.s32.totalorder %s20, 1
      %p106 = por %p104, %p105
      %p108 = scmp.ne.s32.totalorder %s93, %s107
      %p109 = scmp.eq.s32.totalorder %s20, 0
      %p110 = por %p108, %p109
      %s112 = sadd.s32 %s111, 1
      %p115 = scmp.eq.s32.totalorder %s14, 1
      %p116 = scmp.ne.s32.totalorder %s111, %s113
      %p117 = scmp.eq.s32.totalorder %s14, 0
      %p118 = por %p116, %p117
      %p119 = scmp.ne.s32.totalorder %s111, %s113
      %p120 = scmp.eq.s32.totalorder %s19, 1
      %p121 = por %p119, %p120
      %p122 = scmp.ne.s32.totalorder %s113, %s114
      %p123 = scmp.eq.s32.totalorder %s19, 0
      %p124 = por %p122, %p123
      %p125 = scmp.ne.s32.totalorder %s113, %s114
      %p126 = scmp.eq.s32.totalorder %s20, 1
      %p127 = por %p125, %p126
      %p129 = scmp.ne.s32.totalorder %s114, %s128
      %p130 = scmp.eq.s32.totalorder %s20, 0
      %p131 = por %p129, %p130
      %s132 = ssub.s32 %s14, %s21
      %p133 = scmp.eq.s32.totalorder %s132, 0
      %s135 = sadd.s32 %s134, 1
      %s136 = scalar_select %p133, %s134, %s135
      %p139 = pneg %p133
      %p140 = scmp.eq.s32.totalorder %s14, 1
      %p141 = por %p139, %p140
      %p142 = scmp.ne.s32.totalorder %s134, %s137
      %p143 = scmp.eq.s32.totalorder %s14, 0
      %p144 = por %p142, %p143
      %p145 = scmp.ne.s32.totalorder %s134, %s137
      %p146 = scmp.eq.s32.totalorder %s19, 1
      %p147 = por %p145, %p146
      %p148 = scmp.ne.s32.totalorder %s137, %s138
      %p149 = scmp.eq.s32.totalorder %s19, 0
      %p150 = por %p148, %p149
      %p151 = scmp.ne.s32.totalorder %s137, %s138
      %p152 = scmp.eq.s32.totalorder %s20, 1
      %p153 = por %p151, %p152
      %p155 = scmp.ne.s32.totalorder %s138, %s154
      %p156 = scmp.eq.s32.totalorder %s20, 0
      %p157 = por %p155, %p156
      %p158 = scmp.le.s32.totalorder 1, %s14
      %p159 = scmp.lt.s32.totalorder %s14, 3
      %p160 = pnand %p158, %p159
      %p161 = pneg %p160
      // Predicated region
      $region9: #{mlp_forward.1} parent=5 // pred_check
        _
      $region10: #{mlp_forward.1} parent=5 // pred_check_branch
        %163 = sbr.rel (%p160) target = $region12
      $region11: #{mlp_forward.1} parent=5 // pred_region
        %s164 = ssub.s32 %s14, 1
        // Predicated region
        $region13: #{mlp_forward.1} parent=11 // pred_check
          %p165 = pneg %p61
        $region14: #{mlp_forward.1} parent=11 // pred_check_branch
          %167 = sbr.rel (%p165) target = $region16
        $region15: #{mlp_forward.1} parent=11 // pred_region
          _
        $region16: #{mlp_forward.1} parent=11 // pred_fallthru
          _
        // Predicated region
        $region17: #{mlp_forward.1} parent=11 // pred_check
          %p168 = pneg %p82
        $region18: #{mlp_forward.1} parent=11 // pred_check_branch
          %170 = sbr.rel (%p168) target = $region20
        $region19: #{mlp_forward.1} parent=11 // pred_region
          _
        $region20: #{mlp_forward.1} parent=11 // pred_fallthru
          _
        // Predicated region
        $region21: #{mlp_forward.1} parent=11 // pred_check
          %p171 = pneg %p103
        $region22: #{mlp_forward.1} parent=11 // pred_check_branch
          %173 = sbr.rel (%p171) target = $region24
        $region23: #{mlp_forward.1} parent=11 // pred_region
          _
        $region24: #{mlp_forward.1} parent=11 // pred_fallthru
          _
        // Predicated region
        $region25: #{mlp_forward.1} parent=11 // pred_check
          %p174 = pneg %p124
        $region26: #{mlp_forward.1} parent=11 // pred_check_branch
          %176 = sbr.rel (%p174) target = $region28
        $region27: #{mlp_forward.1} parent=11 // pred_region
          _
        $region28: #{mlp_forward.1} parent=11 // pred_fallthru
          _
      $region12: #{mlp_forward.1} parent=5 // pred_fallthru
        _
      %p177 = scmp.lt.s32.totalorder %s14, 2
      // Predicated region
      $region29: #{mlp_forward.1} parent=5 // pred_check
        %p178 = pneg %p177
      $region30: #{mlp_forward.1} parent=5 // pred_check_branch
        %180 = sbr.rel (%p178) target = $region32
      $region31: #{mlp_forward.1} parent=5 // pred_region
        // Predicated region
        $region33: #{mlp_forward.1} parent=31 // pred_check
          %p181 = pneg %p34
        $region34: #{mlp_forward.1} parent=31 // pred_check_branch
          %183 = sbr.rel (%p181) target = $region36
        $region35: #{mlp_forward.1} parent=31 // pred_region
          %p184 = scmp.lt.s32.totalorder %s14, 1
          %s185 = scalar_select %p184, %s14, 1
          %s186 = smul.addr %s185, 4
          %s187 = scalar_lea.vmem %s0, %s186
        $region36: #{mlp_forward.1} parent=31 // pred_fallthru
          _
      $region32: #{mlp_forward.1} parent=5 // pred_fallthru
        _
      %p188 = scmp.le.s32.totalorder 1, %s14
      %p189 = scmp.lt.s32.totalorder %s14, 3
      %p190 = pnand %p188, %p189
      %p191 = pneg %p190
      // Predicated region
      $region37: #{mlp_forward.1} parent=5 // pred_check
        _
      $region38: #{mlp_forward.1} parent=5 // pred_check_branch
        %193 = sbr.rel (%p190) target = $region40
      $region39: #{mlp_forward.1} parent=5 // pred_region
        %s194 = ssub.s32 %s14, 1
        %p195 = scmp.lt.s32.totalorder %s19, 1
        %s196 = scalar_select %p195, %s19, 1
        %s197 = smul.addr %s196, 4
        %s198 = scalar_lea.vmem %s0, %s197
        %p199 = pneg %p40
        %p200 = pneg %p37
        %p201 = pneg %p61
        %p202 = pneg %p58
        %p203 = pneg %p82
        %p204 = pneg %p79
        %p205 = pneg %p103
        %p206 = pneg %p100
        %p207 = pneg %p124
        %p208 = pneg %p121
        %p209 = pneg %p150
        %p210 = pneg %p147
        %s211 = sand.u32 %s137, 1
        %s212 = scalar_lea.sflag [#allocation3], %s211
        %s213 = sand.u32 %s137, 1
        %s214 = smul.addr %s213, 8
        %s215 = scalar_lea.vmem [#allocation2], %s214
        %p216 = scmp.lt.s32.totalorder %s19, 1
        %s217 = scalar_select %p216, %s19, 1
        %s218 = smul.addr %s217, 4
        %s219 = scalar_lea.vmem %s0, %s218
        %v221 = vld [vmem:[%s219] sm:$0xf]
        %v222 = vld [vmem:[%s1] sm:$0xf]
        %v223 = vld [vmem:[%s1 + $0x4] sm:$0xf]
        %v224 = vld [vmem:[%s1 + $0x8] sm:$0xf]
        %v225 = vld [vmem:[%s1 + $0xc] sm:$0xf]
        %v226 = vld [vmem:[%s2] sm:$0x1]
        %v228 = vlaneseq
        %v229 = vshrl.u32 %v228, 7
        %v230 = vsub.s32 0, %v229
        %v231 = vrot.slane %v226, %v230
        %v237 = vunpack.c.l.b16 %v222
        %v238 = vunpack.c.l.b16 %v223
        %v239 = vunpack.c.l.b16 %v224
        %v240 = vunpack.c.l.b16 %v225
        %v241 = vpack.c.b16 %v238, %v237
        %v242 = vpack.c.b16 %v240, %v239
        %vm245 = vcmask 261120
        %v247 = vsel %vm245, %v221, 0
        %249 = vmatprep.subr.bf16.mxu0 0
        %250 = vmatpush1.bf16.msra.mxu0 %v241
        %251 = vmatprep.subr.bf16.mxu0 0
        %252 = vmatpush1.bf16.msra.mxu0 %v242
        %253 = vmatprep.subr.bf16.mxu0 0
        %254 = vmatpush1.bf16.msra.mxu0 0
        %255 = vmatprep.subr.bf16.mxu0 0
        %256 = vmatpush1.bf16.msra.mxu0 0
        %257 = vmatprep.subr.bf16.mxu0 0
        %258 = vmatpush1.bf16.msra.mxu0 0
        %259 = vmatprep.subr.bf16.mxu0 0
        %260 = vmatpush1.bf16.msra.mxu0 0
        %261 = vmatprep.subr.bf16.mxu0 0
        %262 = vmatpush1.bf16.msra.mxu0 0
        %263 = vmatprep.subr.bf16.mxu0 0
        %264 = vmatpush1.bf16.msra.mxu0 0
        %265 = vmatprep.subr.bf16.mxu0 0
        %266 = vmatpush1.bf16.msra.mxu0 0
        %267 = vmatprep.subr.bf16.mxu0 0
        %268 = vmatpush1.bf16.msra.mxu0 0
        %269 = vmatprep.subr.bf16.mxu0 0
        %270 = vmatpush1.bf16.msra.mxu0 0
        %271 = vmatprep.subr.bf16.mxu0 0
        %272 = vmatpush1.bf16.msra.mxu0 0
        %273 = vmatprep.subr.bf16.mxu0 0
        %274 = vmatpush1.bf16.msra.mxu0 0
        %275 = vmatprep.subr.bf16.mxu0 0
        %276 = vmatpush1.bf16.msra.mxu0 0
        %277 = vmatprep.subr.bf16.mxu0 0
        %278 = vmatpush1.bf16.msra.mxu0 0
        %279 = vmatprep.subr.bf16.mxu0 0
        %280 = vmatpush1.bf16.msra.mxu0 0
        %281 = vmatprep.mubr.bf16.mxu0 0
        %282 = vmatmul.mubr.bf16.gmra.mrb[0].mxu0 %v247
        %v283 = vpop.f32.mrb[0].mxu0
        %v284 = vadd.f32 %v231, %v283
        %v285 = vpop.f32.mrb[0].mxu0
        %v286 = vpop.f32.mrb[0].mxu0
        %v287 = vpop.f32.mrb[0].mxu0
        %288 = vdwg.mxu0
        %v289 = vmul.f32 %v284, 0.5
        %v290 = vmul.f32 %v284, 0.044715
        %v291 = vmul.f32 %v290, %v284
        %v292 = vmul.f32 %v291, %v284
        %v293 = vadd.f32 %v284, %v292
        %v294 = vmul.f32 %v293, 0.7978846
        %v295 = vtanh.pop %v294
        %v296 = vadd.f32 %v295, 1.0
        %v297 = vmul.f32 %v289, %v296
        %v298 = vpack.c.bf16 %v297, %v297
        %v299 = vld [vmem:[%s3] sm:$0xf]
        %v300 = vld [vmem:[%s3 + $0x4] sm:$0xf]
        %v301 = vld [vmem:[%s3 + $0x8] sm:$0xf]
        %v302 = vld [vmem:[%s3 + $0xc] sm:$0xf]
        %v303 = vld [vmem:[%s3 + $0x10] sm:$0xf]
        %v304 = vld [vmem:[%s3 + $0x14] sm:$0xf]
        %v305 = vld [vmem:[%s3 + $0x18] sm:$0xf]
        %v306 = vld [vmem:[%s3 + $0x1c] sm:$0xf]
        %v307 = vld [vmem:[%s3 + $0x20] sm:$0xf]
        %v308 = vld [vmem:[%s3 + $0x24] sm:$0xf]
        %v309 = vld [vmem:[%s3 + $0x28] sm:$0xf]
        %v310 = vld [vmem:[%s3 + $0x2c] sm:$0xf]
        %v311 = vld [vmem:[%s3 + $0x30] sm:$0xf]
        %v312 = vld [vmem:[%s3 + $0x34] sm:$0xf]
        %v313 = vld [vmem:[%s3 + $0x38] sm:$0xf]
        %v314 = vld [vmem:[%s3 + $0x3c] sm:$0xf]
        %v315 = vld [vmem:[%s4] sm:$0x1]
        %v317 = vlaneseq
        %v318 = vshrl.u32 %v317, 7
        %v319 = vsub.s32 0, %v318
        %v320 = vrot.slane %v315, %v319
        %v338 = vunpack.c.l.b16 %v299
        %v339 = vunpack.c.l.b16 %v300
        %v340 = vunpack.c.l.b16 %v301
        %v341 = vunpack.c.l.b16 %v302
        %v342 = vunpack.c.l.b16 %v303
        %v343 = vunpack.c.l.b16 %v304
        %v344 = vunpack.c.l.b16 %v305
        %v345 = vunpack.c.l.b16 %v306
        %v346 = vunpack.c.l.b16 %v307
        %v347 = vunpack.c.l.b16 %v308
        %v348 = vunpack.c.l.b16 %v309
        %v349 = vunpack.c.l.b16 %v310
        %v350 = vunpack.c.l.b16 %v311
        %v351 = vunpack.c.l.b16 %v312
        %v352 = vunpack.c.l.b16 %v313
        %v353 = vunpack.c.l.b16 %v314
        %v354 = vpack.c.b16 %v339, %v338
        %v355 = vpack.c.b16 %v341, %v340
        %v356 = vpack.c.b16 %v343, %v342
        %v357 = vpack.c.b16 %v345, %v344
        %v358 = vpack.c.b16 %v347, %v346
        %v359 = vpack.c.b16 %v349, %v348
        %v360 = vpack.c.b16 %v351, %v350
        %v361 = vpack.c.b16 %v353, %v352
        %370 = vmatprep.subr.bf16.mxu0 0
        %371 = vmatpush1.bf16.msra.mxu0 %v354
        %372 = vmatprep.subr.bf16.mxu0 0
        %373 = vmatpush1.bf16.msra.mxu0 %v355
        %374 = vmatprep.subr.bf16.mxu0 0
        %375 = vmatpush1.bf16.msra.mxu0 %v356
        %376 = vmatprep.subr.bf16.mxu0 0
        %377 = vmatpush1.bf16.msra.mxu0 %v357
        %378 = vmatprep.subr.bf16.mxu0 0
        %379 = vmatpush1.bf16.msra.mxu0 %v358
        %380 = vmatprep.subr.bf16.mxu0 0
        %381 = vmatpush1.bf16.msra.mxu0 %v359
        %382 = vmatprep.subr.bf16.mxu0 0
        %383 = vmatpush1.bf16.msra.mxu0 %v360
        %384 = vmatprep.subr.bf16.mxu0 0
        %385 = vmatpush1.bf16.msra.mxu0 %v361
        %386 = vmatprep.subr.bf16.mxu0 0
        %387 = vmatpush1.bf16.msra.mxu0 0
        %388 = vmatprep.subr.bf16.mxu0 0
        %389 = vmatpush1.bf16.msra.mxu0 0
        %390 = vmatprep.subr.bf16.mxu0 0
        %391 = vmatpush1.bf16.msra.mxu0 0
        %392 = vmatprep.subr.bf16.mxu0 0
        %393 = vmatpush1.bf16.msra.mxu0 0
        %394 = vmatprep.subr.bf16.mxu0 0
        %395 = vmatpush1.bf16.msra.mxu0 0
        %396 = vmatprep.subr.bf16.mxu0 0
        %397 = vmatpush1.bf16.msra.mxu0 0
        %398 = vmatprep.subr.bf16.mxu0 0
        %399 = vmatpush1.bf16.msra.mxu0 0
        %400 = vmatprep.subr.bf16.mxu0 0
        %401 = vmatpush1.bf16.msra.mxu0 0
        %402 = vmatprep.mubr.bf16.mxu0 0
        %403 = vmatmul.mubr.bf16.gmra.mrb[0].mxu0 %v298
        %v404 = vpop.f32.mrb[0].mxu0
        %v405 = vadd.f32 %v320, %v404
        %v406 = vpop.f32.mrb[0].mxu0
        %v407 = vpop.f32.mrb[0].mxu0
        %v408 = vpop.f32.mrb[0].mxu0
        %409 = vdwg.mxu0
        %410 = vst.msk [vmem:[%s215] sm:$0xff] %vm245, %v405
        %s411 = sand.u32 %s137, 1
        %s412 = scalar_lea.sflag [#allocation3], %s411
        %s413 = sand.u32 %s137, 1
        %s414 = smul.addr %s413, 8
        %s415 = scalar_lea.vmem [#allocation2], %s414
        // Predicated region
        $region41: #{mlp_forward.1} parent=39 // pred_check
          %p416 = pneg %p147
        $region42: #{mlp_forward.1} parent=39 // pred_check_branch
          %418 = sbr.rel (%p416) target = $region44
        $region43: #{mlp_forward.1} parent=39 // pred_region
          %s420 = ssub.s32 128, 128
          %421 = vsyncadd %s412, %s420
          %s422 = smul.addr %s19, 128
          %s423 = scalar_lea.hbm %s5, %s422
          %s425 = sshll.u32 %s415, 4
          %s426 = int_to_ptr.vmem [resolvable:$true] %s425
          %428 = dma.vmem_to_hbm [thread:$0]  %s426, 128, %s423, %s412
        $region44: #{mlp_forward.1} parent=39 // pred_fallthru
          _
      $region40: #{mlp_forward.1} parent=5 // pred_fallthru
        _
      %p429 = scmp.le.s32.totalorder 2, %s14
      // Predicated region
      $region45: #{mlp_forward.1} parent=5 // pred_check
        %p430 = pneg %p429
      $region46: #{mlp_forward.1} parent=5 // pred_check_branch
        %432 = sbr.rel (%p430) target = $region48
      $region47: #{mlp_forward.1} parent=5 // pred_region
        %s433 = ssub.s32 %s14, 2
        // Predicated region
        $region49: #{mlp_forward.1} parent=47 // pred_check
          %p434 = pneg %p153
        $region50: #{mlp_forward.1} parent=47 // pred_check_branch
          %436 = sbr.rel (%p434) target = $region52
        $region51: #{mlp_forward.1} parent=47 // pred_region
          %s437 = sand.u32 %s138, 1
          %s438 = scalar_lea.sflag [#allocation3], %s437
          %s439 = sand.u32 %s138, 1
          %s440 = smul.addr %s439, 8
          %s441 = scalar_lea.vmem [#allocation2], %s440
          %442 = dma.done %s438, 128
        $region52: #{mlp_forward.1} parent=47 // pred_fallthru
          _
      $region48: #{mlp_forward.1} parent=5 // pred_fallthru
        _
    $region6: #{mlp_forward.1} parent=1 // loop_footer
      %s18 = sadd.s32 1, %s14
    $region7: #{mlp_forward.1} parent=1 // loop_footer_branch
      %13 = sbr.rel target = $region3
    $region8: #{mlp_forward.1} parent=1 // loop_exit
      _
    %443 = vsyncpa [#allocation3], 1
    %s444 = scalar_lea.sflag [#allocation3], 1
    %445 = vsyncpa %s444, 1

</llo_original>
